<compile_context>
chip_gen: v6e
topology: v6e:2x2x1
jax: 0.10.0
libtpu: 0.0.40
codegen_flags: <defaults>
</compile_context>

<pallas_src>
import math

import jax
import jax.numpy as jnp
from jax.experimental import pallas as pl
from jax.experimental.pallas import tpu as pltpu


def _l1_norm_kernel(x_ref, y_ref, o_ref):
    # x_ref / y_ref: (D, tm) planar coordinate tiles, M on the lane axis.
    # Accumulate in float32, cast back to the output dtype on store.
    diff = jnp.abs(x_ref[...].astype(jnp.float32) - y_ref[...].astype(jnp.float32))
    # Unrolled VPU adds over the small, static coordinate axis (D is 2 here).
    acc = diff[0:1, :]
    for i in range(1, diff.shape[0]):
        acc = acc + diff[i : i + 1, :]
    o_ref[...] = acc.astype(o_ref.dtype)


def coord2d_loss(
    coord_out: jax.Array,
    coord_gt: jax.Array,
    *,
    tile_cols: int = 131072,       # columns (rows of the original (M, D) view) per grid step
    min_pallas_elems: int = 0,     # below this many total elements, skip Pallas (launch overhead)
) -> jax.Array:
    assert coord_out.shape == coord_gt.shape
    *lead, d = coord_out.shape
    m = math.prod(lead) if lead else 1

    # Tiny-input fallback: XLA already fuses abs-diff + reduce into one memory
    # pass, and a standalone pallas_call only pays off at large M.
    if m * d < min_pallas_elems:
        return jnp.sum(jnp.abs(coord_out - coord_gt), axis=-1, keepdims=True)

    # Planar, lane-dense layout: (D, M).  One extra XLA transpose pass on the
    # way in; net win for large M (and free if the producer emits this layout).
    x = coord_out.reshape(m, d).T
    y = coord_gt.reshape(m, d).T

    # Tile along the lane (M) axis.  Block last-dim must be a multiple of 128
    # or equal the full array extent; the sublane dims (d and 1) always equal
    # the full array extents, so no dtype-dependent sublane constraint bites.
    if m <= tile_cols:
        tm = m
    else:
        tm = max(128, (tile_cols // 128) * 128)
    grid = (pl.cdiv(m, tm),)

    loss_planar = pl.pallas_call(
        _l1_norm_kernel,
        out_shape=jax.ShapeDtypeStruct((1, m), coord_out.dtype),
        grid=grid,
        in_specs=[
            pl.BlockSpec((d, tm), lambda i: (0, i)),
            pl.BlockSpec((d, tm), lambda i: (0, i)),
        ],
        out_specs=pl.BlockSpec((1, tm), lambda i: (0, i)),
        compiler_params=pltpu.CompilerParams(
            dimension_semantics=("parallel",),
        ),
    )(x, y)

    return loss_planar.reshape(*lead, 1)


if __name__ == "__main__":
    key = jax.random.PRNGKey(0)
    k1, k2, k3, k4 = jax.random.split(key, 4)

    # Case 1: small 2-D keypoint coordinates (batch, joints, 2); M = 128.
    B, N, D = 2, 64, 2
    coord_out = jax.random.normal(k1, (B, N, D), dtype=jnp.float32)
    coord_gt = jax.random.normal(k2, (B, N, D), dtype=jnp.float32)

    loss = coord2d_loss(coord_out, coord_gt)
    jax.block_until_ready(loss)

    ref = jnp.sum(jnp.abs(coord_out - coord_gt), axis=-1, keepdims=True)
    assert loss.shape == (B, N, 1)
    assert jnp.allclose(loss, ref, atol=1e-6, rtol=1e-6)

    # Case 2: M not divisible by the tile -> exercises the masked partial
    # last block (forced small tile_cols so the grid has > 1 step).
    B2, N2 = 2, 200  # M = 400, tile 128 -> 4 grid steps, last one partial
    co2 = jax.random.normal(k3, (B2, N2, D), dtype=jnp.float32)
    cg2 = jax.random.normal(k4, (B2, N2, D), dtype=jnp.float32)

    loss2 = coord2d_loss(co2, cg2, tile_cols=128)
    jax.block_until_ready(loss2)

    ref2 = jnp.sum(jnp.abs(co2 - cg2), axis=-1, keepdims=True)
    assert loss2.shape == (B2, N2, 1)
    assert jnp.allclose(loss2, ref2, atol=1e-6, rtol=1e-6)

    print("KERNEL_OK")
</pallas_src>

<mosaic_0001>
module attributes {stable_mosaic.version = 11 : i64} {
  func.func @_l1_norm_kernel(%arg0: i32, %arg1: memref<2x128xf32, #tpu.memory_space<vmem>>, %arg2: memref<2x128xf32, #tpu.memory_space<vmem>>, %arg3: memref<1x128xf32, #tpu.memory_space<vmem>>) attributes {dimension_semantics = [#tpu.dimension_semantics<parallel>], iteration_bounds = array<i64: 1>, scalar_prefetch = 0 : i64, scratch_operands = 0 : i64, tpu.core_type = #tpu.core_type<tc>, window_params = [{transform_indices = @transform_0, window_bounds = array<i64: 2, 128>}, {transform_indices = @transform_1, window_bounds = array<i64: 2, 128>}, {transform_indices = @transform_2, window_bounds = array<i64: 1, 128>}]} {
    %c0 = arith.constant 0 : index
    %c0_0 = arith.constant 0 : index
    %0 = vector.load %arg1[%c0, %c0_0] : memref<2x128xf32, #tpu.memory_space<vmem>>, vector<2x128xf32>
    %c0_1 = arith.constant 0 : index
    %c0_2 = arith.constant 0 : index
    %1 = vector.load %arg2[%c0_1, %c0_2] : memref<2x128xf32, #tpu.memory_space<vmem>>, vector<2x128xf32>
    %2 = arith.subf %0, %1 : vector<2x128xf32>
    %3 = math.absf %2 : vector<2x128xf32>
    %4 = vector.extract_strided_slice %3 {offsets = [0, 0], sizes = [1, 128], strides = [1, 1]} : vector<2x128xf32> to vector<1x128xf32>
    %5 = vector.extract_strided_slice %3 {offsets = [1, 0], sizes = [1, 128], strides = [1, 1]} : vector<2x128xf32> to vector<1x128xf32>
    %6 = arith.addf %4, %5 : vector<1x128xf32>
    %c0_3 = arith.constant 0 : index
    %c0_4 = arith.constant 0 : index
    %7 = vector.load %arg3[%c0_3, %c0_4] : memref<1x128xf32, #tpu.memory_space<vmem>>, vector<1x128xf32>
    tpu.vector_store %arg3[%c0_3, %c0_4], %6 {strides = array<i32>} : memref<1x128xf32, #tpu.memory_space<vmem>>, vector<1x128xf32>,
    return
  }
  func.func @transform_0(%arg0: i32) -> (i32, i32) {
    %c0_i32 = arith.constant 0 : i32
    %c0_i32_0 = arith.constant 0 : i32
    return %c0_i32, %arg0 : i32, i32
  }
  func.func @transform_1(%arg0: i32) -> (i32, i32) {
    %c0_i32 = arith.constant 0 : i32
    %c0_i32_0 = arith.constant 0 : i32
    return %c0_i32, %arg0 : i32, i32
  }
  func.func @transform_2(%arg0: i32) -> (i32, i32) {
    %c0_i32 = arith.constant 0 : i32
    %c0_i32_0 = arith.constant 0 : i32
    return %c0_i32, %arg0 : i32, i32
  }
}

</mosaic_0001>

<llo_original>
// kernel: tpu_custom_call.1
$region0: #{tpu_custom_call.1}
  #allocation0 [shape = 'u32[]', space=smem, size = 0x4, offset = 0x4, fixed_abs, tag = 'smem constant byte address 0x4 - core index']
  #allocation1 [shape = 'u32[144,128]{1,0:T(1,128)}', space=vmem, size = 0x12000, scoped, tag = 'internal scratch']
  %s0 = inlined_call_operand.hbm [shape: f32[2,128], index: 0, kind: input, shape index: {}]
  %s1 = inlined_call_operand.hbm [shape: f32[2,128], index: 1, kind: input, shape index: {}]
  %s2 = inlined_call_operand.hbm [shape: f32[1,128], index: 2, kind: output, shape index: {}]
  %s3 = sld [smem:[#allocation0]]
  $region26: #{tpu_custom_call.1} parent=0
    _
  %s5 = ssub.s32 1, %s3
  %s6 = scalar_select 0, %s5, %s3
  $region1: #{tpu_custom_call.1} parent=0
    #allocation2 [shape = 'u8[1024]{0}', space=vmem, size = 0x400, scoped, tag = 'input window, operand 0, single buffered']
    #allocation3 [shape = 's32[1]{0}', space=sflag, size = 0x4, scoped, tag = 'scoped memory for tpu_custom_call.1']
    #allocation4 [shape = 's32[1]{0}', space=sflag, size = 0x4, scoped, tag = 'scoped memory for tpu_custom_call.1']
    #allocation5 [shape = 'u8[1024]{0}', space=vmem, size = 0x400, scoped, tag = 'input window, operand 1, single buffered']
    #allocation6 [shape = 's32[1]{0}', space=sflag, size = 0x4, scoped, tag = 'scoped memory for tpu_custom_call.1']
    #allocation7 [shape = 'u8[512]{0}', space=vmem, size = 0x400, scoped, tag = 'output window, operand 0, single buffered']
    %7 = vsyncpa [#allocation3], 0
    %8 = vsyncpa [#allocation6], 0
    %9 = vsyncpa [#allocation4], 0
    // Predicated region
    $region2: #{tpu_custom_call.1} parent=1 // pred_check
      _
    $region3: #{tpu_custom_call.1} parent=1 // pred_check_branch
      %11 = sbr.rel (0) target = $region5
    $region4: #{tpu_custom_call.1} parent=1 // pred_region
      %s13 = ssub.s32 32, 32
      %14 = vsyncadd [#allocation3], %s13
      %s16 = sshll.u32 [#allocation2], 4
      %s17 = int_to_ptr.vmem [resolvable:$true] %s16
      %19 = dma.hbm_to_vmem [thread:$0]  %s0, 32, %s17, [#allocation3]
    $region5: #{tpu_custom_call.1} parent=1 // pred_fallthru
      _
    // Predicated region
    $region6: #{tpu_custom_call.1} parent=1 // pred_check
      _
    $region7: #{tpu_custom_call.1} parent=1 // pred_check_branch
      %21 = sbr.rel (0) target = $region9
    $region8: #{tpu_custom_call.1} parent=1 // pred_region
      %s23 = ssub.s32 32, 32
      %24 = vsyncadd [#allocation6], %s23
      %s26 = sshll.u32 [#allocation5], 4
      %s27 = int_to_ptr.vmem [resolvable:$true] %s26
      %29 = dma.hbm_to_vmem [thread:$0]  %s1, 32, %s27, [#allocation6]
    $region9: #{tpu_custom_call.1} parent=1 // pred_fallthru
      _
    // Predicated region
    $region10: #{tpu_custom_call.1} parent=1 // pred_check
      _
    $region11: #{tpu_custom_call.1} parent=1 // pred_check_branch
      %31 = sbr.rel (0) target = $region13
    $region12: #{tpu_custom_call.1} parent=1 // pred_region
      %32 = dma.done [#allocation3], 32
    $region13: #{tpu_custom_call.1} parent=1 // pred_fallthru
      _
    // Predicated region
    $region14: #{tpu_custom_call.1} parent=1 // pred_check
      _
    $region15: #{tpu_custom_call.1} parent=1 // pred_check_branch
      %34 = sbr.rel (0) target = $region17
    $region16: #{tpu_custom_call.1} parent=1 // pred_region
      %35 = dma.done [#allocation6], 32
    $region17: #{tpu_custom_call.1} parent=1 // pred_fallthru
      _
    %v36 = vld [vmem:[#allocation2] sm:$0x3]
    %v37 = vld [vmem:[#allocation5] sm:$0x3]
    %v38 = vsub.f32 %v36, %v37
    %v39 = vand.u32 2147483647, %v38
    %v41 = vrot.slane %v39, 1
    %v43 = vadd.f32 %v39, %v41
    %44 = vst [vmem:[#allocation7] sm:$0x1] %v43
    // Predicated region
    $region18: #{tpu_custom_call.1} parent=1 // pred_check
      _
    $region19: #{tpu_custom_call.1} parent=1 // pred_check_branch
      %46 = sbr.rel (0) target = $region21
    $region20: #{tpu_custom_call.1} parent=1 // pred_region
      %s48 = ssub.s32 16, 16
      %49 = vsyncadd [#allocation4], %s48
      %s51 = sshll.u32 [#allocation7], 4
      %s52 = int_to_ptr.vmem [resolvable:$true] %s51
      %54 = dma.vmem_to_hbm [thread:$0]  %s52, 16, %s2, [#allocation4]
    $region21: #{tpu_custom_call.1} parent=1 // pred_fallthru
      _
    // Predicated region
    $region22: #{tpu_custom_call.1} parent=1 // pred_check
      _
    $region23: #{tpu_custom_call.1} parent=1 // pred_check_branch
      %56 = sbr.rel (0) target = $region25
    $region24: #{tpu_custom_call.1} parent=1 // pred_region
      %57 = dma.done [#allocation4], 16
    $region25: #{tpu_custom_call.1} parent=1 // pred_fallthru
      _
    %58 = vsyncpa [#allocation3], 1
    %59 = vsyncpa [#allocation6], 1
    %60 = vsyncpa [#allocation4], 1

</llo_original>
